<compile_context>
chip_gen: v6e
topology: v6e:2x2x1
jax: 0.10.0
libtpu: 0.0.40
codegen_flags: <defaults>
</compile_context>

<pallas_src>
import jax
import jax.numpy as jnp
from jax.experimental import pallas as pl
from jax.experimental.pallas import tpu as pltpu


def _softmax_kernel(x_ref, o_ref):
    # One tile of rows: numerically-stable softmax along the lane (last) axis.
    x = x_ref[...].astype(jnp.float32)
    m = jnp.max(x, axis=-1, keepdims=True)          # XLU lane reduce
    e = jnp.exp(x - m)                              # EUP
    s = jnp.sum(e, axis=-1, keepdims=True)          # XLU lane reduce
    inv = pl.reciprocal(s, approx=True)             # EUP vrcp: free slot
    inv = inv * (2.0 - s * inv)                     # one Newton step -> ~f32
    o_ref[...] = (e * inv).astype(o_ref.dtype)


def _pick_row_tile(n_rows, n_cols, io_itemsize, vmem_budget_bytes=24 << 20):
    """Largest row tile (multiple of 8, <= 2048) whose double-buffered
    input+output working set fits a per-generation-safe VMEM budget."""
    if n_rows < 8:
        # A block equal to the full array dim is always a legal block shape.
        return n_rows
    elem_bytes = max(4, int(io_itemsize))            # conservative (f32 temps)
    # working set = 2 buffers x (in tile + out tile) = 4 x rows x L x bytes
    max_rows = vmem_budget_bytes // (4 * max(1, n_cols) * elem_bytes)
    rt = int(min(2048, max(8, max_rows)))
    rt = min(rt, n_rows)
    return (rt // 8) * 8


def softmax_classifier_forward(x, *, row_tile=None):
    """Softmax over the last dim of a 2D (N, L) array, computed in Pallas.

    Matches SoftmaxClassifier.forward (nn.Softmax applied to a 2D tensor).
    """
    assert x.ndim == 2, "Softmax requires a 2D tensor as input"
    N, L = x.shape
    itemsize = jnp.dtype(x.dtype).itemsize
    if row_tile is None:
        row_tile = _pick_row_tile(N, L, itemsize)

    grid = (pl.cdiv(N, row_tile),)

    cost = pl.CostEstimate(
        flops=5 * N * L,                 # sub/max/sum/mul elementwise work
        transcendentals=N * L,           # one exp per element
        bytes_accessed=2 * N * L * itemsize,
    )

    return pl.pallas_call(
        _softmax_kernel,
        out_shape=jax.ShapeDtypeStruct((N, L), x.dtype),
        grid_spec=pltpu.PrefetchScalarGridSpec(
            num_scalar_prefetch=0,
            grid=grid,
            in_specs=[pl.BlockSpec((row_tile, L), lambda i: (i, 0))],
            out_specs=pl.BlockSpec((row_tile, L), lambda i: (i, 0)),
        ),
        compiler_params=pltpu.CompilerParams(
            dimension_semantics=("parallel",),   # v7x: shard rows over 2 TCs
            vmem_limit_bytes=48 * 1024 * 1024,   # past v5e's 16 MiB scoped
                                                 # default, under v7x's 64 MiB
        ),
        cost_estimate=cost,
    )(x)


if __name__ == "__main__":
    key = jax.random.PRNGKey(0)
    N, L = 8, 32  # small (N, L) logits, consistent with the module's forward
    x = jax.random.normal(key, (N, L), dtype=jnp.float32)

    y = softmax_classifier_forward(x)
    y = jax.block_until_ready(y)

    # Sanity check against plain-JAX reference (same semantics as nn.Softmax).
    ref = jax.nn.softmax(x, axis=-1)
    assert y.shape == (N, L)
    assert jnp.allclose(y, ref, atol=2e-6), "mismatch vs reference softmax"
    assert jnp.allclose(jnp.sum(y, axis=-1), 1.0, atol=2e-6)

    # Ragged row count exercises the pl.cdiv grid / masked last-block path.
    N2 = 13
    x2 = jax.random.normal(jax.random.PRNGKey(1), (N2, L), dtype=jnp.float32)
    y2 = jax.block_until_ready(softmax_classifier_forward(x2))
    ref2 = jax.nn.softmax(x2, axis=-1)
    assert y2.shape == (N2, L)
    assert jnp.allclose(y2, ref2, atol=2e-6), "mismatch on ragged row count"

    # bf16 I/O path (compute still in f32 inside the kernel).
    x3 = jax.random.normal(jax.random.PRNGKey(2), (64, 128), dtype=jnp.bfloat16)
    y3 = jax.block_until_ready(softmax_classifier_forward(x3))
    ref3 = jax.nn.softmax(x3.astype(jnp.float32), axis=-1)
    assert y3.shape == (64, 128)
    assert jnp.allclose(y3.astype(jnp.float32), ref3, atol=1e-2), "bf16 mismatch"

    print("KERNEL_OK")
</pallas_src>

<mosaic_0001>
module attributes {stable_mosaic.version = 11 : i64} {
  func.func @_softmax_kernel(%arg0: i32, %arg1: memref<8x32xf32, #tpu.memory_space<vmem>>, %arg2: memref<8x32xf32, #tpu.memory_space<vmem>>) attributes {dimension_semantics = [#tpu.dimension_semantics<parallel>], iteration_bounds = array<i64: 1>, scalar_prefetch = 0 : i64, scratch_operands = 0 : i64, tpu.core_type = #tpu.core_type<tc>, window_params = [{transform_indices = @transform_0, window_bounds = array<i64: 8, 32>}, {transform_indices = @transform_1, window_bounds = array<i64: 8, 32>}]} {
    %c0 = arith.constant 0 : index
    %c0_0 = arith.constant 0 : index
    %0 = vector.load %arg1[%c0, %c0_0] : memref<8x32xf32, #tpu.memory_space<vmem>>, vector<8x32xf32>
    %cst = arith.constant dense<0xFF800000> : vector<8xf32>
    %1 = vector.multi_reduction <maximumf>, %0, %cst [1] : vector<8x32xf32> to vector<8xf32>
    %2 = vector.shape_cast %1 : vector<8xf32> to vector<8x1xf32>
    %3 = vector.broadcast %2 : vector<8x1xf32> to vector<8x32xf32>
    %4 = arith.subf %0, %3 : vector<8x32xf32>
    %5 = math.exp %4 : vector<8x32xf32>
    %cst_1 = arith.constant dense<0.000000e+00> : vector<8xf32>
    %6 = vector.multi_reduction <add>, %5, %cst_1 [1] : vector<8x32xf32> to vector<8xf32>
    %7 = vector.shape_cast %6 : vector<8xf32> to vector<8x1xf32>
    %8 = tpu.reciprocal %7 {approx = true} : vector<8x1xf32> -> vector<8x1xf32>
    %9 = arith.mulf %7, %8 : vector<8x1xf32>
    %cst_2 = arith.constant 2.000000e+00 : f32
    %10 = vector.broadcast %cst_2 : f32 to vector<8x1xf32>
    %11 = arith.subf %10, %9 : vector<8x1xf32>
    %12 = arith.mulf %8, %11 : vector<8x1xf32>
    %13 = vector.broadcast %12 : vector<8x1xf32> to vector<8x32xf32>
    %14 = arith.mulf %5, %13 : vector<8x32xf32>
    %c0_3 = arith.constant 0 : index
    %c0_4 = arith.constant 0 : index
    %15 = vector.load %arg2[%c0_3, %c0_4] : memref<8x32xf32, #tpu.memory_space<vmem>>, vector<8x32xf32>
    tpu.vector_store %arg2[%c0_3, %c0_4], %14 {strides = array<i32>} : memref<8x32xf32, #tpu.memory_space<vmem>>, vector<8x32xf32>,
    return
  }
  func.func @transform_0(%arg0: i32) -> (i32, i32) {
    %c0_i32 = arith.constant 0 : i32
    %c0_i32_0 = arith.constant 0 : i32
    return %arg0, %c0_i32 : i32, i32
  }
  func.func @transform_1(%arg0: i32) -> (i32, i32) {
    %c0_i32 = arith.constant 0 : i32
    %c0_i32_0 = arith.constant 0 : i32
    return %arg0, %c0_i32 : i32, i32
  }
}

</mosaic_0001>

<llo_original>
// kernel: tpu_custom_call.1
$region0: #{tpu_custom_call.1}
  #allocation0 [shape = 'u32[]', space=smem, size = 0x4, offset = 0x4, fixed_abs, tag = 'smem constant byte address 0x4 - core index']
  #allocation1 [shape = 'u32[144,128]{1,0:T(1,128)}', space=vmem, size = 0x12000, scoped, tag = 'internal scratch']
  %s0 = inlined_call_operand.hbm [shape: f32[8,32], index: 0, kind: input, shape index: {}]
  %s1 = inlined_call_operand.hbm [shape: f32[8,32], index: 1, kind: output, shape index: {}]
  %s2 = sld [smem:[#allocation0]]
  $region18: #{tpu_custom_call.1} parent=0
    _
  %s4 = ssub.s32 1, %s2
  %s5 = scalar_select 0, %s4, %s2
  $region1: #{tpu_custom_call.1} parent=0
    #allocation2 [shape = 'u8[4096]{0}', space=vmem, size = 0x1000, scoped, tag = 'input window, operand 0, single buffered']
    #allocation3 [shape = 's32[1]{0}', space=sflag, size = 0x4, scoped, tag = 'scoped memory for tpu_custom_call.1']
    #allocation4 [shape = 's32[1]{0}', space=sflag, size = 0x4, scoped, tag = 'scoped memory for tpu_custom_call.1']
    #allocation5 [shape = 'u8[4096]{0}', space=vmem, size = 0x1000, scoped, tag = 'output window, operand 0, single buffered']
    %6 = vsyncpa [#allocation3], 0
    %7 = vsyncpa [#allocation4], 0
    // Predicated region
    $region2: #{tpu_custom_call.1} parent=1 // pred_check
      _
    $region3: #{tpu_custom_call.1} parent=1 // pred_check_branch
      %9 = sbr.rel (0) target = $region5
    $region4: #{tpu_custom_call.1} parent=1 // pred_region
      %s11 = ssub.s32 128, 128
      %12 = vsyncadd [#allocation3], %s11
      %s14 = sshll.u32 [#allocation2], 4
      %s15 = int_to_ptr.vmem [resolvable:$true] %s14
      %17 = dma.hbm_to_vmem [thread:$0]  %s0, 128, %s15, [#allocation3]
    $region5: #{tpu_custom_call.1} parent=1 // pred_fallthru
      _
    // Predicated region
    $region6: #{tpu_custom_call.1} parent=1 // pred_check
      _
    $region7: #{tpu_custom_call.1} parent=1 // pred_check_branch
      %19 = sbr.rel (0) target = $region9
    $region8: #{tpu_custom_call.1} parent=1 // pred_region
      %20 = dma.done [#allocation3], 128
    $region9: #{tpu_custom_call.1} parent=1 // pred_fallthru
      _
    %v21 = vld [vmem:[#allocation2] sm:$0xff]
    %vm22 = vcmask 261120
    %v23 = vsel %vm22, %v21, -inf
    %24 = vmax.xlane.f32.xlu0 %v23
    %v25 = vpop.xlane.xlu0 %24
    %v26 = vsub.f32 %v21, %v25
    %v27 = vmul.f32 %v26, 1.442695
    %v28 = vpow.pop %v27
    %v29 = vsel %vm22, %v28, 0.0
    %30 = vadd.xlane.f32.xlu0 %v29
    %v31 = vpop.xlane.xlu0 %30
    %v32 = vrcp.pop %v31
    %v33 = vmul.f32 %v31, %v32
    %v34 = vsub.f32 2.0, %v33
    %v35 = vmul.f32 %v32, %v34
    %v36 = vmul.f32 %v28, %v35
    %37 = vst.msk [vmem:[#allocation5] sm:$0xff] %vm22, %v36
    // Predicated region
    $region10: #{tpu_custom_call.1} parent=1 // pred_check
      _
    $region11: #{tpu_custom_call.1} parent=1 // pred_check_branch
      %39 = sbr.rel (0) target = $region13
    $region12: #{tpu_custom_call.1} parent=1 // pred_region
      %s41 = ssub.s32 128, 128
      %42 = vsyncadd [#allocation4], %s41
      %s44 = sshll.u32 [#allocation5], 4
      %s45 = int_to_ptr.vmem [resolvable:$true] %s44
      %47 = dma.vmem_to_hbm [thread:$0]  %s45, 128, %s1, [#allocation4]
    $region13: #{tpu_custom_call.1} parent=1 // pred_fallthru
      _
    // Predicated region
    $region14: #{tpu_custom_call.1} parent=1 // pred_check
      _
    $region15: #{tpu_custom_call.1} parent=1 // pred_check_branch
      %49 = sbr.rel (0) target = $region17
    $region16: #{tpu_custom_call.1} parent=1 // pred_region
      %50 = dma.done [#allocation4], 128
    $region17: #{tpu_custom_call.1} parent=1 // pred_fallthru
      _
    %51 = vsyncpa [#allocation3], 1
    %52 = vsyncpa [#allocation4], 1

</llo_original>
